<compile_context>
chip_gen: v5e
topology: v5e:2x2
jax: 0.10.0
libtpu: 0.0.40
codegen_flags: <defaults>
</compile_context>

<pallas_src>
import jax
import jax.numpy as jnp
from jax import lax
from jax.experimental import pallas as pl
from jax.experimental.pallas import tpu as pltpu


def proj_decoder_kernel(ids_ref, anim_ref, tbl_ref, head_ref,
                        sum_ref, logits_ref, emb_bf16):
    tm = sum_ref.shape[0]
    i = pl.program_id(0)   # token-tile index
    j = pl.program_id(1)   # vocab-tile index (inner axis)

    # Embedding gather + add: once per token tile, on the first vocab step.
    @pl.when(j == 0)
    def _():
        base = i * tm

        def gather_row(t, carry):
            wid = ids_ref[base + t]                      # word id, in [0, V)
            aid = anim_ref[base + t]                     # animacy id, offset by V
            sum_ref[pl.ds(t, 1), :] = (tbl_ref[pl.ds(wid, 1), :]
                                       + tbl_ref[pl.ds(aid, 1), :])
            return carry

        lax.fori_loop(0, tm, gather_row, 0)
        # Hoisted bf16 copy of the tile's embeddings, reused for every vocab tile.
        emb_bf16[...] = sum_ref[...].astype(jnp.bfloat16)

    # Tied LM-head projection over this vocab-column tile: bf16 MXU operands,
    # f32 accumulation, bf16 writeback.
    # TODO(synk): the pretrained HF decoder transformer stack (`self.decoder`)
    # has no in-script equivalent; only inputs_embeds construction and a
    # tied-embedding output projection are implemented in-kernel.
    logits_ref[...] = jnp.dot(
        emb_bf16[...], head_ref[...],
        preferred_element_type=jnp.float32).astype(logits_ref.dtype)


def proj_decoder_forward(input_ids, animacy, word_table, anim_table, *,
                         tm=128, tn=512):
    """input_ids, animacy: int [B, S]; word_table: [V, E]; anim_table: [A, E]."""
    B, S = input_ids.shape
    V, E = word_table.shape
    A = anim_table.shape[0]
    T = B * S

    E_pad = pl.cdiv(E, 128) * 128
    R = V + A
    R_pad = pl.cdiv(R, 8) * 8              # sublane-aligned rows (no matmul over R)
    V_pad = pl.cdiv(V, 128) * 128
    tn = min(tn, V_pad)
    V_pad = pl.cdiv(V_pad, tn) * tn
    T_pad = pl.cdiv(T, tm) * tm

    # Combined gather table (word rows then animacy rows), f32 so word+anim is
    # an exact single f32 add, identical to the PyTorch reference.
    # TODO(synk): for real vocab sizes (V*E*4 > VMEM) replace the resident
    # table with per-row HBM DMA gather (memory_space=pl.ANY + make_async_copy).
    tbl = jnp.zeros((R_pad, E_pad), jnp.float32)
    tbl = tbl.at[:V, :E].set(word_table.astype(jnp.float32))
    tbl = tbl.at[V:V + A, :E].set(anim_table.astype(jnp.float32))

    # Pre-cast, pre-transposed bf16 tied LM head (word rows only): the cast and
    # relayout happen exactly once here, never inside the grid loop.
    head = jnp.zeros((E_pad, V_pad), jnp.bfloat16)
    head = head.at[:E, :V].set(word_table.T.astype(jnp.bfloat16))

    ids_flat = jnp.zeros((T_pad,), jnp.int32).at[:T].set(
        input_ids.reshape(T).astype(jnp.int32))
    # Animacy ids offset by V into the combined table; padded tokens point at
    # the all-zero padding_idx animacy row (harmless, sliced off below).
    anim_flat = jnp.full((T_pad,), V, jnp.int32).at[:T].set(
        animacy.reshape(T).astype(jnp.int32) + V)

    grid = (T_pad // tm, V_pad // tn)

    sum_pad, logits_pad = pl.pallas_call(
        proj_decoder_kernel,
        out_shape=(jax.ShapeDtypeStruct((T_pad, E_pad), jnp.float32),
                   jax.ShapeDtypeStruct((T_pad, V_pad), jnp.bfloat16)),
        grid_spec=pltpu.PrefetchScalarGridSpec(
            num_scalar_prefetch=2,           # ids + animacy ids live in SMEM
            grid=grid,
            in_specs=[
                # Combined gather table: constant block index -> VMEM-resident.
                pl.BlockSpec((R_pad, E_pad), lambda i, j, *_: (0, 0)),
                # Tied head streamed in (E_pad, tn) vocab-column tiles.
                pl.BlockSpec((E_pad, tn), lambda i, j, *_: (0, j)),
            ],
            out_specs=[
                pl.BlockSpec((tm, E_pad), lambda i, j, *_: (i, 0)),
                pl.BlockSpec((tm, tn), lambda i, j, *_: (i, j)),
            ],
            scratch_shapes=[pltpu.VMEM((tm, E_pad), jnp.bfloat16)],
        ),
        compiler_params=pltpu.CompilerParams(
            dimension_semantics=("parallel", "arbitrary"),
            vmem_limit_bytes=32 * 1024 * 1024),
    )(ids_flat, anim_flat, tbl, head)

    sum_emb = sum_pad[:T, :E].reshape(B, S, E)
    logits = logits_pad[:T, :V].reshape(B, S, V)
    return sum_emb, logits


if __name__ == "__main__":
    # Small but non-degenerate: 256 tokens -> 2 token tiles of tm=128,
    # 1024-word vocab -> 2 vocab tiles of tn=512 (exercises both grid axes
    # with the production tile defaults).
    B, S = 4, 64
    V, E = 1024, 32
    A = 5                         # nn.Embedding(5, emb_size, padding_idx=0)

    key = jax.random.PRNGKey(0)
    k_ids, k_anim, k_wtbl, k_atbl = jax.random.split(key, 4)

    input_ids = jax.random.randint(k_ids, (B, S), 0, V, dtype=jnp.int32)
    animacy = jax.random.randint(k_anim, (B, S), 0, A, dtype=jnp.int32)

    # Deterministic parameter init (nn.Embedding ~ N(0,1); padding_idx=0 row zeroed).
    word_table = jax.random.normal(k_wtbl, (V, E), dtype=jnp.float32)
    anim_table = jax.random.normal(k_atbl, (A, E), dtype=jnp.float32)
    anim_table = anim_table.at[0].set(0.0)

    sum_emb, logits = proj_decoder_forward(input_ids, animacy, word_table, anim_table)
    jax.block_until_ready((sum_emb, logits))

    # Embedding path is an exact f32 gather + add.
    ref_sum = word_table[input_ids] + anim_table[animacy]
    assert jnp.allclose(sum_emb, ref_sum, atol=1e-6)

    # Tied LM-head stand-in: bf16 MXU operands, f32 accumulation, bf16 writeback.
    ref_logits = jnp.einsum(
        "bse,ve->bsv",
        ref_sum.astype(jnp.bfloat16).astype(jnp.float32),
        word_table.astype(jnp.bfloat16).astype(jnp.float32))
    assert jnp.allclose(logits.astype(jnp.float32), ref_logits, atol=0.15, rtol=0.05)

    print("KERNEL_OK")
</pallas_src>

<mosaic_0001>
module attributes {stable_mosaic.version = 11 : i64} {
  func.func @proj_decoder_kernel(%arg0: i32, %arg1: i32, %arg2: memref<256xi32, #tpu.memory_space<smem>>, %arg3: memref<256xi32, #tpu.memory_space<smem>>, %arg4: memref<1032x128xf32, #tpu.memory_space<vmem>>, %arg5: memref<128x512xbf16, #tpu.memory_space<vmem>>, %arg6: memref<128x128xf32, #tpu.memory_space<vmem>>, %arg7: memref<128x512xbf16, #tpu.memory_space<vmem>>, %arg8: memref<128x128xbf16, #tpu.memory_space<vmem>>) attributes {dimension_semantics = [#tpu.dimension_semantics<parallel>, #tpu.dimension_semantics<arbitrary>], iteration_bounds = array<i64: 2, 2>, scalar_prefetch = 2 : i64, scratch_operands = 1 : i64, tpu.core_type = #tpu.core_type<tc>, window_params = [{pipeline_mode = #tpu.pipeline_mode<synchronous>, transform_indices = @transform_0, window_bounds = array<i64: 1032, 128>}, {transform_indices = @transform_1, window_bounds = array<i64: 128, 512>}, {transform_indices = @transform_2, window_bounds = array<i64: 128, 128>}, {transform_indices = @transform_3, window_bounds = array<i64: 128, 512>}]} {
    %c0_i32 = arith.constant 0 : i32
    %0 = arith.cmpi eq, %arg1, %c0_i32 : i32
    %1 = arith.extui %0 : i1 to i32
    %c0_i32_0 = arith.constant 0 : i32
    %2 = arith.cmpi ne, %1, %c0_i32_0 : i32
    scf.if %2 {
      %c128_i32 = arith.constant 128 : i32
      %8 = arith.muli %arg0, %c128_i32 : i32
      %c0_i32_6 = arith.constant 0 : i32
      %c128_i32_7 = arith.constant 128 : i32
      %9 = arith.addi %c0_i32_6, %c128_i32_7 : i32
      %c1_i32 = arith.constant 1 : i32
      scf.for %arg9 = %c0_i32_6 to %9 step %c1_i32  : i32 {
        %13 = arith.addi %8, %arg9 : i32
        %14 = arith.index_cast %13 : i32 to index
        %15 = memref.load %arg2[%14] : memref<256xi32, #tpu.memory_space<smem>>
        %16 = arith.addi %8, %arg9 : i32
        %17 = arith.index_cast %16 : i32 to index
        %18 = memref.load %arg3[%17] : memref<256xi32, #tpu.memory_space<smem>>
        %19 = arith.index_cast %15 : i32 to index
        %c0_13 = arith.constant 0 : index
        %20 = vector.load %arg4[%19, %c0_13] : memref<1032x128xf32, #tpu.memory_space<vmem>>, vector<1x128xf32>
        %21 = arith.index_cast %18 : i32 to index
        %c0_14 = arith.constant 0 : index
        %22 = vector.load %arg4[%21, %c0_14] : memref<1032x128xf32, #tpu.memory_space<vmem>>, vector<1x128xf32>
        %23 = arith.addf %20, %22 : vector<1x128xf32>
        %24 = arith.index_cast %arg9 : i32 to index
        %c0_15 = arith.constant 0 : index
        %25 = vector.load %arg6[%24, %c0_15] : memref<128x128xf32, #tpu.memory_space<vmem>>, vector<1x128xf32>
        tpu.vector_store %arg6[%24, %c0_15], %23 {strides = array<i32>} : memref<128x128xf32, #tpu.memory_space<vmem>>, vector<1x128xf32>,
      }
      %c128_i32_8 = arith.constant 128 : i32
      %c0_9 = arith.constant 0 : index
      %c0_10 = arith.constant 0 : index
      %10 = vector.load %arg6[%c0_9, %c0_10] : memref<128x128xf32, #tpu.memory_space<vmem>>, vector<128x128xf32>
      %11 = arith.truncf %10 : vector<128x128xf32> to vector<128x128xbf16>
      %c0_11 = arith.constant 0 : index
      %c0_12 = arith.constant 0 : index
      %12 = vector.load %arg8[%c0_11, %c0_12] : memref<128x128xbf16, #tpu.memory_space<vmem>>, vector<128x128xbf16>
      tpu.vector_store %arg8[%c0_11, %c0_12], %11 {strides = array<i32>} : memref<128x128xbf16, #tpu.memory_space<vmem>>, vector<128x128xbf16>,
    } else {
    }
    %c0 = arith.constant 0 : index
    %c0_1 = arith.constant 0 : index
    %3 = vector.load %arg8[%c0, %c0_1] : memref<128x128xbf16, #tpu.memory_space<vmem>>, vector<128x128xbf16>
    %c0_2 = arith.constant 0 : index
    %c0_3 = arith.constant 0 : index
    %4 = vector.load %arg5[%c0_2, %c0_3] : memref<128x512xbf16, #tpu.memory_space<vmem>>, vector<128x512xbf16>
    %cst = arith.constant dense<0.000000e+00> : vector<128x512xf32>
    %5 = tpu.matmul %3, %4, %cst {dimension_numbers = #tpu.dot_dimension_numbers<[1], [0], [0], [1], [0, 0, 1, 1], [], []>} : vector<128x128xbf16>, vector<128x512xbf16>, vector<128x512xf32> -> vector<128x512xf32>
    %6 = arith.truncf %5 : vector<128x512xf32> to vector<128x512xbf16>
    %c0_4 = arith.constant 0 : index
    %c0_5 = arith.constant 0 : index
    %7 = vector.load %arg7[%c0_4, %c0_5] : memref<128x512xbf16, #tpu.memory_space<vmem>>, vector<128x512xbf16>
    tpu.vector_store %arg7[%c0_4, %c0_5], %6 {strides = array<i32>} : memref<128x512xbf16, #tpu.memory_space<vmem>>, vector<128x512xbf16>,
    return
  }
  func.func @transform_0(%arg0: i32, %arg1: i32, %arg2: memref<256xi32, #tpu.memory_space<smem>>, %arg3: memref<256xi32, #tpu.memory_space<smem>>) -> (i32, i32) {
    %c0_i32 = arith.constant 0 : i32
    %c0_i32_0 = arith.constant 0 : i32
    %c0_i32_1 = arith.constant 0 : i32
    return %c0_i32, %c0_i32_0 : i32, i32
  }
  func.func @transform_1(%arg0: i32, %arg1: i32, %arg2: memref<256xi32, #tpu.memory_space<smem>>, %arg3: memref<256xi32, #tpu.memory_space<smem>>) -> (i32, i32) {
    %c0_i32 = arith.constant 0 : i32
    %c0_i32_0 = arith.constant 0 : i32
    return %c0_i32, %arg1 : i32, i32
  }
  func.func @transform_2(%arg0: i32, %arg1: i32, %arg2: memref<256xi32, #tpu.memory_space<smem>>, %arg3: memref<256xi32, #tpu.memory_space<smem>>) -> (i32, i32) {
    %c0_i32 = arith.constant 0 : i32
    %c0_i32_0 = arith.constant 0 : i32
    return %arg0, %c0_i32 : i32, i32
  }
  func.func @transform_3(%arg0: i32, %arg1: i32, %arg2: memref<256xi32, #tpu.memory_space<smem>>, %arg3: memref<256xi32, #tpu.memory_space<smem>>) -> (i32, i32) {
    %c0_i32 = arith.constant 0 : i32
    return %arg0, %arg1 : i32, i32
  }
}

</mosaic_0001>

<llo_original>
// kernel: tpu_custom_call.1
$region0: #{tpu_custom_call.1}
  #allocation0 [shape = 'u32[]', space=smem, size = 0x4, offset = 0x4, fixed_abs, tag = 'smem constant byte address 0x4 - core index']
  #allocation1 [shape = 'u32[72,128]{1,0:T(1,128)}', space=vmem, size = 0x9000, scoped, tag = 'internal scratch']
  #allocation2 [shape = 'bf16[128,128]{1,0:T(8,128)(2,1)}', space=vmem, size = 0x8000, scoped, tag = 'scratch operand']
  #allocation3 [shape = 's32[1]{0}', space=sflag, size = 0x4, scoped, tag = 'scoped memory for tpu_custom_call.1']
  #allocation4 [shape = 'u8[1024]{0}', space=smem, size = 0x400, scoped, tag = 'prefetched SMEM operand 0']
  #allocation5 [shape = 'u8[1024]{0}', space=smem, size = 0x400, scoped, tag = 'prefetched SMEM operand 1']
  %s0 = inlined_call_operand.hbm [shape: s32[256], index: 0, kind: input, shape index: {}]
  %s1 = inlined_call_operand.hbm [shape: s32[256], index: 1, kind: input, shape index: {}]
  %s2 = inlined_call_operand.hbm [shape: f32[1032,128], index: 2, kind: input, shape index: {}]
  %s3 = inlined_call_operand.hbm [shape: bf16[128,1024], index: 3, kind: input, shape index: {}]
  %s4 = inlined_call_operand.hbm [shape: f32[256,128], index: 4, kind: output, shape index: {0}]
  %s5 = inlined_call_operand.hbm [shape: bf16[256,1024], index: 5, kind: output, shape index: {1}]
  %6 = xla_tuple %s4, %s5
  %s7 = sld [smem:[#allocation0]]
  $region68: #{tpu_custom_call.1} parent=0
    _
  %s9 = ssub.s32 1, %s7
  %s10 = scalar_select 0, %s9, %s7
  %s12 = sshll.u32 %s0, 4
  %s13 = int_to_ptr.hbm [resolvable:$true] %s12
  %15 = dma.hbm_to_smem %s13, 32, [#allocation4], [#allocation3]
  %s17 = sshll.u32 %s1, 4
  %s18 = int_to_ptr.hbm [resolvable:$true] %s17
  %20 = dma.hbm_to_smem %s18, 32, [#allocation5], [#allocation3]
  %22 = dma.done [#allocation3], 64
  %23 = sfence
  $region1: #{tpu_custom_call.1} parent=0
    #allocation6 [shape = 'u8[528384]{0}', space=vmem, size = 0x81000, scoped, tag = 'input window, operand 2, single buffered']
    #allocation7 [shape = 's32[2]{0}', space=sflag, size = 0x8, scoped, tag = 'scoped memory for tpu_custom_call.1']
    #allocation8 [shape = 's32[2]{0}', space=sflag, size = 0x8, scoped, tag = 'scoped memory for tpu_custom_call.1']
    #allocation9 [shape = 'u8[262144]{0}', space=vmem, size = 0x40000, scoped, tag = 'input window, operand 3']
    #allocation10 [shape = 's32[2]{0}', space=sflag, size = 0x8, scoped, tag = 'scoped memory for tpu_custom_call.1']
    #allocation11 [shape = 'u8[131072]{0}', space=vmem, size = 0x20000, scoped, tag = 'output window, operand 0']
    #allocation12 [shape = 'u8[262144]{0}', space=vmem, size = 0x40000, scoped, tag = 'output window, operand 1']
    #allocation13 [shape = 's32[2]{0}', space=sflag, size = 0x8, scoped, tag = 'scoped memory for tpu_custom_call.1']
    %24 = vsyncpa [#allocation7], 0
    %25 = vsyncpa [#allocation10], 0
    %s26 = scalar_lea.sflag [#allocation10], 1
    %27 = vsyncpa %s26, 0
    %28 = vsyncpa [#allocation8], 0
    %s29 = scalar_lea.sflag [#allocation8], 1
    %30 = vsyncpa %s29, 0
    %31 = vsyncpa [#allocation13], 0
    %s32 = scalar_lea.sflag [#allocation13], 1
    %33 = vsyncpa %s32, 0
    loop: start=0, step=1, limit=6
    $region2: #{tpu_custom_call.1} parent=1 // loop_pre_header
      _
    $region3: #{tpu_custom_call.1} parent=1 // loop_header
      %s35 = sphi 0, %s39
      %p36 = scmp.ge.s32.totalorder %s35, 6
      %s42 = sphi 0, %s54
      %s43 = sphi 0, %s50
      %s44 = sphi 0, %s42
      %s45 = sphi 0, %s43
      %s46 = sphi 0, %s44
      %s47 = sphi 0, %s45
      %s55 = sphi 0, %s55
      %s57 = sphi 0, %s55
      %s58 = sphi 0, %s57
      %s72 = sphi 0, %s58
      %s78 = sphi 0, %s80
      %s81 = sphi 0, %s78
      %s82 = sphi 0, %s81
      %s98 = sphi 0, %s82
      %s104 = sphi 0, %s106
      %s107 = sphi 0, %s104
      %s108 = sphi 0, %s107
      %s124 = sphi 0, %s108
      %s132 = sphi 0, %s134
      %s135 = sphi 0, %s132
      %s136 = sphi 0, %s135
      %s152 = sphi 0, %s136
    $region4: #{tpu_custom_call.1} parent=1 // loop_header_branch
      %38 = sbr.rel (%p36) target = $region8
    $region5: #{tpu_custom_call.1} parent=1 // loop_body
      %s40 = ssub.s32 %s35, 1
      %s41 = ssub.s32 %s35, 2
      %s48 = sadd.s32 1, %s43
      %p49 = scmp.ge.s32.totalorder %s48, 2
      %s50 = scalar_select %p49, 0, %s48
      %s51 = sadd.s32 1, %s42
      %s52 = scalar_select %p49, %s51, %s42
      %p53 = scmp.ge.s32.totalorder %s52, 2
      %s54 = scalar_select %p53, 0, %s52
      %s56 = sadd.s32 %s55, 1
      %p59 = scmp.eq.s32.totalorder %s35, 3
      %p60 = scmp.ne.s32.totalorder %s55, %s57
      %p61 = scmp.eq.s32.totalorder %s35, 0
      %p62 = por %p60, %p61
      %p63 = scmp.ne.s32.totalorder %s55, %s57
      %p64 = scmp.eq.s32.totalorder %s40, 3
      %p65 = por %p63, %p64
      %p66 = scmp.ne.s32.totalorder %s57, %s58
      %p67 = scmp.eq.s32.totalorder %s40, 0
      %p68 = por %p66, %p67
      %p69 = scmp.ne.s32.totalorder %s57, %s58
      %p70 = scmp.eq.s32.totalorder %s41, 3
      %p71 = por %p69, %p70
      %p73 = scmp.ne.s32.totalorder %s58, %s72
      %p74 = scmp.eq.s32.totalorder %s41, 0
      %p75 = por %p73, %p74
      %s76 = ssub.s32 %s43, %s50
      %p77 = scmp.eq.s32.totalorder %s76, 0
      %s79 = sadd.s32 %s78, 1
      %s80 = scalar_select %p77, %s78, %s79
      %p83 = pneg %p77
      %p84 = scmp.eq.s32.totalorder %s35, 3
      %p85 = por %p83, %p84
      %p86 = scmp.ne.s32.totalorder %s78, %s81
      %p87 = scmp.eq.s32.totalorder %s35, 0
      %p88 = por %p86, %p87
      %p89 = scmp.ne.s32.totalorder %s78, %s81
      %p90 = scmp.eq.s32.totalorder %s40, 3
      %p91 = por %p89, %p90
      %p92 = scmp.ne.s32.totalorder %s81, %s82
      %p93 = scmp.eq.s32.totalorder %s40, 0
      %p94 = por %p92, %p93
      %p95 = scmp.ne.s32.totalorder %s81, %s82
      %p96 = scmp.eq.s32.totalorder %s41, 3
      %p97 = por %p95, %p96
      %p99 = scmp.ne.s32.totalorder %s82, %s98
      %p100 = scmp.eq.s32.totalorder %s41, 0
      %p101 = por %p99, %p100
      %s102 = ssub.s32 %s42, %s54
      %p103 = scmp.eq.s32.totalorder %s102, 0
      %s105 = sadd.s32 %s104, 1
      %s106 = scalar_select %p103, %s104, %s105
      %p109 = pneg %p103
      %p110 = scmp.eq.s32.totalorder %s35, 3
      %p111 = por %p109, %p110
      %p112 = scmp.ne.s32.totalorder %s104, %s107
      %p113 = scmp.eq.s32.totalorder %s35, 0
      %p114 = por %p112, %p113
      %p115 = scmp.ne.s32.totalorder %s104, %s107
      %p116 = scmp.eq.s32.totalorder %s40, 3
      %p117 = por %p115, %p116
      %p118 = scmp.ne.s32.totalorder %s107, %s108
      %p119 = scmp.eq.s32.totalorder %s40, 0
      %p120 = por %p118, %p119
      %p121 = scmp.ne.s32.totalorder %s107, %s108
      %p122 = scmp.eq.s32.totalorder %s41, 3
      %p123 = por %p121, %p122
      %p125 = scmp.ne.s32.totalorder %s108, %s124
      %p126 = scmp.eq.s32.totalorder %s41, 0
      %p127 = por %p125, %p126
      %s128 = ssub.s32 %s42, %s54
      %s129 = ssub.s32 %s43, %s50
      %s130 = sor.u32 %s128, %s129
      %p131 = scmp.eq.s32.totalorder %s130, 0
      %s133 = sadd.s32 %s132, 1
      %s134 = scalar_select %p131, %s132, %s133
      %p137 = pneg %p131
      %p138 = scmp.eq.s32.totalorder %s35, 3
      %p139 = por %p137, %p138
      %p140 = scmp.ne.s32.totalorder %s132, %s135
      %p141 = scmp.eq.s32.totalorder %s35, 0
      %p142 = por %p140, %p141
      %p143 = scmp.ne.s32.totalorder %s132, %s135
      %p144 = scmp.eq.s32.totalorder %s40, 3
      %p145 = por %p143, %p144
      %p146 = scmp.ne.s32.totalorder %s135, %s136
      %p147 = scmp.eq.s32.totalorder %s40, 0
      %p148 = por %p146, %p147
      %p149 = scmp.ne.s32.totalorder %s135, %s136
      %p150 = scmp.eq.s32.totalorder %s41, 3
      %p151 = por %p149, %p150
      %p153 = scmp.ne.s32.totalorder %s136, %s152
      %p154 = scmp.eq.s32.totalorder %s41, 0
      %p155 = por %p153, %p154
      %p156 = scmp.le.s32.totalorder 1, %s35
      %p157 = scmp.lt.s32.totalorder %s35, 5
      %p158 = pnand %p156, %p157
      %p159 = pneg %p158
      // Predicated region
      $region9: #{tpu_custom_call.1} parent=5 // pred_check
        _
      $region10: #{tpu_custom_call.1} parent=5 // pred_check_branch
        %161 = sbr.rel (%p158) target = $region12
      $region11: #{tpu_custom_call.1} parent=5 // pred_region
        %s162 = ssub.s32 %s35, 1
        // Predicated region
        $region13: #{tpu_custom_call.1} parent=11 // pred_check
          %p163 = pneg %p68
        $region14: #{tpu_custom_call.1} parent=11 // pred_check_branch
          %165 = sbr.rel (%p163) target = $region16
        $region15: #{tpu_custom_call.1} parent=11 // pred_region
          %167 = vsyncadd [#allocation7], 0
          %s168 = sshll.u32 %s2, 4
          %s169 = int_to_ptr.hbm [resolvable:$true] %s168
          %s170 = sshll.u32 [#allocation6], 4
          %s171 = int_to_ptr.vmem [resolvable:$true] %s170
          %176 = dma.hbm_to_vmem [thread:$0]  %s169, 16512, %s171, [#allocation7], 128, 128, 8
        $region16: #{tpu_custom_call.1} parent=11 // pred_fallthru
          _
      $region12: #{tpu_custom_call.1} parent=5 // pred_fallthru
        _
      %p177 = scmp.lt.s32.totalorder %s35, 4
      // Predicated region
      $region17: #{tpu_custom_call.1} parent=5 // pred_check
        %p178 = pneg %p177
      $region18: #{tpu_custom_call.1} parent=5 // pred_check_branch
        %180 = sbr.rel (%p178) target = $region20
      $region19: #{tpu_custom_call.1} parent=5 // pred_region
        // Predicated region
        $region21: #{tpu_custom_call.1} parent=19 // pred_check
          %p181 = pneg %p88
        $region22: #{tpu_custom_call.1} parent=19 // pred_check_branch
          %183 = sbr.rel (%p181) target = $region24
        $region23: #{tpu_custom_call.1} parent=19 // pred_region
          %s184 = sand.u32 %s78, 1
          %s185 = scalar_lea.sflag [#allocation10], %s184
          %s186 = sand.u32 %s78, 1
          %s187 = smul.addr %s186, 256
          %s188 = scalar_lea.vmem [#allocation9], %s187
          %s189 = smul.u32 4, %s43
          %191 = vsyncadd %s185, 0
          %s192 = smul.addr %s189, 4
          %s193 = scalar_lea.hbm %s3, %s192
          %s194 = sshll.u32 %s193, 4
          %s195 = int_to_ptr.hbm [resolvable:$true] %s194
          %s196 = sshll.u32 %s188, 4
          %s197 = int_to_ptr.vmem [resolvable:$true] %s196
          %202 = dma.hbm_to_vmem [thread:$0]  %s195, 4096, %s197, %s185, 512, 256, 16
        $region24: #{tpu_custom_call.1} parent=19 // pred_fallthru
          _
      $region20: #{tpu_custom_call.1} parent=5 // pred_fallthru
        _
      %p203 = scmp.le.s32.totalorder 1, %s35
      %p204 = scmp.lt.s32.totalorder %s35, 5
      %p205 = pnand %p203, %p204
      %p206 = pneg %p205
      // Predicated region
      $region25: #{tpu_custom_call.1} parent=5 // pred_check
        _
      $region26: #{tpu_custom_call.1} parent=5 // pred_check_branch
        %208 = sbr.rel (%p205) target = $region28
      $region27: #{tpu_custom_call.1} parent=5 // pred_region
        %s209 = ssub.s32 %s35, 1
        // Predicated region
        $region29: #{tpu_custom_call.1} parent=27 // pred_check
          %p210 = pneg %p68
        $region30: #{tpu_custom_call.1} parent=27 // pred_check_branch
          %212 = sbr.rel (%p210) target = $region32
        $region31: #{tpu_custom_call.1} parent=27 // pred_region
          %214 = dma.done [#allocation7], 16512
        $region32: #{tpu_custom_call.1} parent=27 // pred_fallthru
          _
        %s215 = sand.u32 %s81, 1
        %s216 = scalar_lea.sflag [#allocation10], %s215
        %s217 = sand.u32 %s81, 1
        %s218 = smul.addr %s217, 256
        %s219 = scalar_lea.vmem [#allocation9], %s218
        // Predicated region
        $region33: #{tpu_custom_call.1} parent=27 // pred_check
          %p220 = pneg %p94
        $region34: #{tpu_custom_call.1} parent=27 // pred_check_branch
          %222 = sbr.rel (%p220) target = $region36
        $region35: #{tpu_custom_call.1} parent=27 // pred_region
          %224 = dma.done %s216, 4096
        $region36: #{tpu_custom_call.1} parent=27 // pred_fallthru
          _
        %p225 = pneg %p68
        %p226 = pneg %p65
        %s227 = sand.u32 %s81, 1
        %s228 = scalar_lea.sflag [#allocation10], %s227
        %s229 = sand.u32 %s81, 1
        %s230 = smul.addr %s229, 256
        %s231 = scalar_lea.vmem [#allocation9], %s230
        %p232 = pneg %p94
        %p233 = pneg %p91
        %p234 = pneg %p120
        %p235 = pneg %p117
        %s236 = sand.u32 %s107, 1
        %s237 = scalar_lea.sflag [#allocation8], %s236
        %s238 = sand.u32 %s107, 1
        %s239 = smul.addr %s238, 128
        %s240 = scalar_lea.vmem [#allocation11], %s239
        %p241 = pneg %p148
        %p242 = pneg %p145
        %s243 = sand.u32 %s135, 1
        %s244 = scalar_lea.sflag [#allocation13], %s243
        %s245 = sand.u32 %s135, 1
        %s246 = smul.addr %s245, 256
        %s247 = scalar_lea.vmem [#allocation12], %s246
        %s248 = smul.u32 4, %s45
        %s249 = smul.u32 16, %s44
        %s250 = smul.u32 16, %s44
        %s251 = smul.u32 4, %s45
        %p252 = scmp.eq.s32.totalorder %s45, 0
        // Predicated region
        $region37: #{tpu_custom_call.1} parent=27 // pred_check
          %p253 = pneg %p252
        $region38: #{tpu_custom_call.1} parent=27 // pred_check_branch
          %255 = sbr.rel (%p253) target = $region40
        $region39: #{tpu_custom_call.1} parent=27 // pred_region
          %s256 = smul.u32 %s44, 128
          loop: start=0, step=1, limit=128
          $region41: #{tpu_custom_call.1} parent=39 // loop_pre_header
            _
          $region42: #{tpu_custom_call.1} parent=39 // loop_header
            %s258 = sphi 0, %s262
            %p259 = scmp.ge.s32.totalorder %s258, 128
          $region43: #{tpu_custom_call.1} parent=39 // loop_header_branch
            %261 = sbr.rel (%p259) target = $region47
          $region44: #{tpu_custom_call.1} parent=39 // loop_body
            %s263 = sadd.s32 %s256, %s258
            %s264 = sld [smem:[#allocation4 + %s263]]
            %s265 = sld [smem:[#allocation5 + %s263]]
            %s266 = scalar_lea.vmem [#allocation6], %s264
            %v267 = vld [vmem:[%s266] sm:$0x1]
            %s268 = scalar_lea.vmem [#allocation6], %s265
            %v269 = vld [vmem:[%s268] sm:$0x1]
            %v270 = vadd.f32 %v267, %v269
            %s271 = scalar_lea.vmem %s240, %s258 [#allocation11]
            %272 = vst [vmem:[%s271] sm:$0x1] %v270
          $region45: #{tpu_custom_call.1} parent=39 // loop_footer
            %s262 = sadd.s32 1, %s258
          $region46: #{tpu_custom_call.1} parent=39 // loop_footer_branch
            %257 = sbr.rel target = $region42
          $region47: #{tpu_custom_call.1} parent=39 // loop_exit
            _
          %v273 = vld [vmem:[%s240] sm:$0xff]
          %v274 = vld [vmem:[%s240 + $0x8] sm:$0xff]
          %v275 = vld [vmem:[%s240 + $0x10] sm:$0xff]
          %v276 = vld [vmem:[%s240 + $0x18] sm:$0xff]
          %v277 = vld [vmem:[%s240 + $0x20] sm:$0xff]
          %v278 = vld [vmem:[%s240 + $0x28] sm:$0xff]
          %v279 = vld [vmem:[%s240 + $0x30] sm:$0xff]
          %v280 = vld [vmem:[%s240 + $0x38] sm:$0xff]
          %v281 = vld [vmem:[%s240 + $0x40] sm:$0xff]
          %v282 = vld [vmem:[%s240 + $0x48] sm:$0xff]
          %v283 = vld [vmem:[%s240 + $0x50] sm:$0xff]
          %v284 = vld [vmem:[%s240 + $0x58] sm:$0xff]
          %v285 = vld [vmem:[%s240 + $0x60] sm:$0xff]
          %v286 = vld [vmem:[%s240 + $0x68] sm:$0xff]
          %v287 = vld [vmem:[%s240 + $0x70] sm:$0xff]
          %v288 = vld [vmem:[%s240 + $0x78] sm:$0xff]
          %v289 = vpack.c.bf16 %v273, %v273
          %v290 = vpack.c.bf16 %v274, %v274
          %v291 = vpack.c.bf16 %v275, %v275
          %v292 = vpack.c.bf16 %v276, %v276
          %v293 = vpack.c.bf16 %v277, %v277
          %v294 = vpack.c.bf16 %v278, %v278
          %v295 = vpack.c.bf16 %v279, %v279
          %v296 = vpack.c.bf16 %v280, %v280
          %v297 = vpack.c.bf16 %v281, %v281
          %v298 = vpack.c.bf16 %v282, %v282
          %v299 = vpack.c.bf16 %v283, %v283
          %v300 = vpack.c.bf16 %v284, %v284
          %v301 = vpack.c.bf16 %v285, %v285
          %v302 = vpack.c.bf16 %v286, %v286
          %v303 = vpack.c.bf16 %v287, %v287
          %v304 = vpack.c.bf16 %v288, %v288
          %305 = vst [vmem:[#allocation2] sm:$0xf] %v289
          %306 = vst [vmem:[#allocation2 + $0x4] sm:$0xf] %v290
          %307 = vst [vmem:[#allocation2 + $0x8] sm:$0xf] %v291
          %308 = vst [vmem:[#allocation2 + $0xc] sm:$0xf] %v292
          %309 = vst [vmem:[#allocation2 + $0x10] sm:$0xf] %v293
          %310 = vst [vmem:[#allocation2 + $0x14] sm:$0xf] %v294
          %311 = vst [vmem:[#allocation2 + $0x18] sm:$0xf] %v295
          %312 = vst [vmem:[#allocation2 + $0x1c] sm:$0xf] %v296
          %313 = vst [vmem:[#allocation2 + $0x20] sm:$0xf] %v297
          %314 = vst [vmem:[#allocation2 + $0x24] sm:$0xf] %v298
          %315 = vst [vmem:[#allocation2 + $0x28] sm:$0xf] %v299
          %316 = vst [vmem:[#allocation2 + $0x2c] sm:$0xf] %v300
          %317 = vst [vmem:[#allocation2 + $0x30] sm:$0xf] %v301
          %318 = vst [vmem:[#allocation2 + $0x34] sm:$0xf] %v302
          %319 = vst [vmem:[#allocation2 + $0x38] sm:$0xf] %v303
          %320 = vst [vmem:[#allocation2 + $0x3c] sm:$0xf] %v304
        $region40: #{tpu_custom_call.1} parent=27 // pred_fallthru
          _
        %v321 = vld [vmem:[#allocation2] sm:$0xf]
        %v322 = vld [vmem:[#allocation2 + $0x4] sm:$0xf]
        %v323 = vld [vmem:[#allocation2 + $0x8] sm:$0xf]
        %v324 = vld [vmem:[#allocation2 + $0xc] sm:$0xf]
        %v325 = vld [vmem:[#allocation2 + $0x10] sm:$0xf]
        %v326 = vld [vmem:[#allocation2 + $0x14] sm:$0xf]
        %v327 = vld [vmem:[#allocation2 + $0x18] sm:$0xf]
        %v328 = vld [vmem:[#allocation2 + $0x1c] sm:$0xf]
        %v329 = vld [vmem:[#allocation2 + $0x20] sm:$0xf]
        %v330 = vld [vmem:[#allocation2 + $0x24] sm:$0xf]
        %v331 = vld [vmem:[#allocation2 + $0x28] sm:$0xf]
        %v332 = vld [vmem:[#allocation2 + $0x2c] sm:$0xf]
        %v333 = vld [vmem:[#allocation2 + $0x30] sm:$0xf]
        %v334 = vld [vmem:[#allocation2 + $0x34] sm:$0xf]
        %v335 = vld [vmem:[#allocation2 + $0x38] sm:$0xf]
        %v336 = vld [vmem:[#allocation2 + $0x3c] sm:$0xf]
        %v337 = vld [vmem:[%s219] sm:$0xff]
        %v338 = vld [vmem:[%s219 + $0x8] sm:$0xff]
        %v339 = vld [vmem:[%s219 + $0x10] sm:$0xff]
        %v340 = vld [vmem:[%s219 + $0x18] sm:$0xff]
        %v341 = vld [vmem:[%s219 + $0x20] sm:$0xff]
        %v342 = vld [vmem:[%s219 + $0x28] sm:$0xff]
        %v343 = vld [vmem:[%s219 + $0x30] sm:$0xff]
        %v344 = vld [vmem:[%s219 + $0x38] sm:$0xff]
        %v345 = vld [vmem:[%s219 + $0x40] sm:$0xff]
        %v346 = vld [vmem:[%s219 + $0x48] sm:$0xff]
        %v347 = vld [vmem:[%s219 + $0x50] sm:$0xff]
        %v348 = vld [vmem:[%s219 + $0x58] sm:$0xff]
        %v349 = vld [vmem:[%s219 + $0x60] sm:$0xff]
        %v350 = vld [vmem:[%s219 + $0x68] sm:$0xff]
        %v351 = vld [vmem:[%s219 + $0x70] sm:$0xff]
        %v352 = vld [vmem:[%s219 + $0x78] sm:$0xff]
        %v353 = vld [vmem:[%s219 + $0x80] sm:$0xff]
        %v354 = vld [vmem:[%s219 + $0x88] sm:$0xff]
        %v355 = vld [vmem:[%s219 + $0x90] sm:$0xff]
        %v356 = vld [vmem:[%s219 + $0x98] sm:$0xff]
        %v357 = vld [vmem:[%s219 + $0xa0] sm:$0xff]
        %v358 = vld [vmem:[%s219 + $0xa8] sm:$0xff]
        %v359 = vld [vmem:[%s219 + $0xb0] sm:$0xff]
        %v360 = vld [vmem:[%s219 + $0xb8] sm:$0xff]
        %v361 = vld [vmem:[%s219 + $0xc0] sm:$0xff]
        %v362 = vld [vmem:[%s219 + $0xc8] sm:$0xff]
        %v363 = vld [vmem:[%s219 + $0xd0] sm:$0xff]
        %v364 = vld [vmem:[%s219 + $0xd8] sm:$0xff]
        %v365 = vld [vmem:[%s219 + $0xe0] sm:$0xff]
        %v366 = vld [vmem:[%s219 + $0xe8] sm:$0xff]
        %v367 = vld [vmem:[%s219 + $0xf0] sm:$0xff]
        %v368 = vld [vmem:[%s219 + $0xf8] sm:$0xff]
        %v385 = vunpack.c.l.b16 %v321
        %v386 = vunpack.c.l.b16 %v322
        %v387 = vunpack.c.l.b16 %v323
        %v388 = vunpack.c.l.b16 %v324
        %v389 = vunpack.c.l.b16 %v325
        %v390 = vunpack.c.l.b16 %v326
        %v391 = vunpack.c.l.b16 %v327
        %v392 = vunpack.c.l.b16 %v328
        %v393 = vunpack.c.l.b16 %v329
        %v394 = vunpack.c.l.b16 %v330
        %v395 = vunpack.c.l.b16 %v331
        %v396 = vunpack.c.l.b16 %v332
        %v397 = vunpack.c.l.b16 %v333
        %v398 = vunpack.c.l.b16 %v334
        %v399 = vunpack.c.l.b16 %v335
        %v400 = vunpack.c.l.b16 %v336
        %v401 = vpack.c.b16 %v386, %v385
        %v402 = vpack.c.b16 %v388, %v387
        %v403 = vpack.c.b16 %v390, %v389
        %v404 = vpack.c.b16 %v392, %v391
        %v405 = vpack.c.b16 %v394, %v393
        %v406 = vpack.c.b16 %v396, %v395
        %v407 = vpack.c.b16 %v398, %v397
        %v408 = vpack.c.b16 %v400, %v399
        %v449 = vunpack.c.l.b16 %v337
        %v450 = vunpack.c.h.b16 %v337
        %v451 = vunpack.c.l.b16 %v338
        %v452 = vunpack.c.h.b16 %v338
        %v453 = vunpack.c.l.b16 %v339
        %v454 = vunpack.c.h.b16 %v339
        %v455 = vunpack.c.l.b16 %v340
        %v456 = vunpack.c.h.b16 %v340
        %v457 = vunpack.c.l.b16 %v341
        %v458 = vunpack.c.h.b16 %v341
        %v459 = vunpack.c.l.b16 %v342
        %v460 = vunpack.c.h.b16 %v342
        %v461 = vunpack.c.l.b16 %v343
        %v462 = vunpack.c.h.b16 %v343
        %v463 = vunpack.c.l.b16 %v344
        %v464 = vunpack.c.h.b16 %v344
        %v465 = vunpack.c.l.b16 %v345
        %v466 = vunpack.c.h.b16 %v345
        %v467 = vunpack.c.l.b16 %v346
        %v468 = vunpack.c.h.b16 %v346
        %v469 = vunpack.c.l.b16 %v347
        %v470 = vunpack.c.h.b16 %v347
        %v471 = vunpack.c.l.b16 %v348
        %v472 = vunpack.c.h.b16 %v348
        %v473 = vunpack.c.l.b16 %v349
        %v474 = vunpack.c.h.b16 %v349
        %v475 = vunpack.c.l.b16 %v350
        %v476 = vunpack.c.h.b16 %v350
        %v477 = vunpack.c.l.b16 %v351
        %v478 = vunpack.c.h.b16 %v351
        %v479 = vunpack.c.l.b16 %v352
        %v480 = vunpack.c.h.b16 %v352
        %v481 = vunpack.c.l.b16 %v353
        %v482 = vunpack.c.h.b16 %v353
        %v483 = vunpack.c.l.b16 %v354
        %v484 = vunpack.c.h.b16 %v354
        %v485 = vunpack.c.l.b16 %v355
        %v486 = vunpack.c.h.b16 %v355
        %v487 = vunpack.c.l.b16 %v356
        %v488 = vunpack.c.h.b16 %v356
        %v489 = vunpack.c.l.b16 %v357
        %v490 = vunpack.c.h.b16 %v357
        %v491 = vunpack.c.l.b16 %v358
        %v492 = vunpack.c.h.b16 %v358
        %v493 = vunpack.c.l.b16 %v359
        %v494 = vunpack.c.h.b16 %v359
        %v495 = vunpack.c.l.b16 %v360
        %v496 = vunpack.c.h.b16 %v360
        %v497 = vunpack.c.l.b16 %v361
        %v498 = vunpack.c.h.b16 %v361
        %v499 = vunpack.c.l.b16 %v362
        %v500 = vunpack.c.h.b16 %v362
        %v501 = vunpack.c.l.b16 %v363
        %v502 = vunpack.c.h.b16 %v363
        %v503 = vunpack.c.l.b16 %v364
        %v504 = vunpack.c.h.b16 %v364
        %v505 = vunpack.c.l.b16 %v365
        %v506 = vunpack.c.h.b16 %v365
        %v507 = vunpack.c.l.b16 %v366
        %v508 = vunpack.c.h.b16 %v366
        %v509 = vunpack.c.l.b16 %v367
        %v510 = vunpack.c.h.b16 %v367
        %v511 = vunpack.c.l.b16 %v368
        %v512 = vunpack.c.h.b16 %v368
        %v513 = vpack.c.b16 %v453, %v449
        %v514 = vpack.c.b16 %v454, %v450
        %v515 = vpack.c.b16 %v455, %v451
        %v516 = vpack.c.b16 %v456, %v452
        %v517 = vpack.c.b16 %v461, %v457
        %v518 = vpack.c.b16 %v462, %v458
        %v519 = vpack.c.b16 %v463, %v459
        %v520 = vpack.c.b16 %v464, %v460
        %v521 = vpack.c.b16 %v469, %v465
        %v522 = vpack.c.b16 %v470, %v466
        %v523 = vpack.c.b16 %v471, %v467
        %v524 = vpack.c.b16 %v472, %v468
        %v525 = vpack.c.b16 %v477, %v473
        %v526 = vpack.c.b16 %v478, %v474
        %v527 = vpack.c.b16 %v479, %v475
        %v528 = vpack.c.b16 %v480, %v476
        %v529 = vpack.c.b16 %v485, %v481
        %v530 = vpack.c.b16 %v486, %v482
        %v531 = vpack.c.b16 %v487, %v483
        %v532 = vpack.c.b16 %v488, %v484
        %v533 = vpack.c.b16 %v493, %v489
        %v534 = vpack.c.b16 %v494, %v490
        %v535 = vpack.c.b16 %v495, %v491
        %v536 = vpack.c.b16 %v496, %v492
        %v537 = vpack.c.b16 %v501, %v497
        %v538 = vpack.c.b16 %v502, %v498
        %v539 = vpack.c.b16 %v503, %v499
        %v540 = vpack.c.b16 %v504, %v500
        %v541 = vpack.c.b16 %v509, %v505
        %v542 = vpack.c.b16 %v510, %v506
        %v543 = vpack.c.b16 %v511, %v507
        %v544 = vpack.c.b16 %v512, %v508
        %577 = vmatpush.bf16.msra.mxu0 %v541
        %578 = vmatpush.bf16.msra.mxu0 %v537
        %579 = vmatpush.bf16.msra.mxu0 %v533
        %580 = vmatpush.bf16.msra.mxu0 %v529
        %581 = vmatpush.bf16.msra.mxu0 %v525
        %582 = vmatpush.bf16.msra.mxu0 %v521
        %583 = vmatpush.bf16.msra.mxu0 %v517
        %584 = vmatpush.bf16.msra.mxu0 %v513
        %585 = vmatmul.bf16.gmra.mxu0 %v401
        %v586 = vpop.f32.mrf.mxu0
        %v587 = vadd.f32 0.0, %v586
        %v588 = vpop.f32.mrf.mxu0
        %v589 = vadd.f32 0.0, %v588
        %590 = vmatmul.bf16.gmra.mxu0 %v402
        %v591 = vpop.f32.mrf.mxu0
        %v592 = vadd.f32 0.0, %v591
        %v593 = vpop.f32.mrf.mxu0
        %v594 = vadd.f32 0.0, %v593
        %595 = vmatmul.bf16.gmra.mxu0 %v403
        %v596 = vpop.f32.mrf.mxu0
        %v597 = vadd.f32 0.0, %v596
        %v598 = vpop.f32.mrf.mxu0
        %v599 = vadd.f32 0.0, %v598
        %600 = vmatmul.bf16.gmra.mxu0 %v404
        %v601 = vpop.f32.mrf.mxu0
        %v602 = vadd.f32 0.0, %v601
        %v603 = vpop.f32.mrf.mxu0
        %v604 = vadd.f32 0.0, %v603
        %605 = vmatmul.bf16.gmra.mxu0 %v405
        %v606 = vpop.f32.mrf.mxu0
        %v607 = vadd.f32 0.0, %v606
        %v608 = vpop.f32.mrf.mxu0
        %v609 = vadd.f32 0.0, %v608
        %610 = vmatmul.bf16.gmra.mxu0 %v406
        %v611 = vpop.f32.mrf.mxu0
        %v612 = vadd.f32 0.0, %v611
        %v613 = vpop.f32.mrf.mxu0
        %v614 = vadd.f32 0.0, %v613
        %615 = vmatmul.bf16.gmra.mxu0 %v407
        %v616 = vpop.f32.mrf.mxu0
        %v617 = vadd.f32 0.0, %v616
        %v618 = vpop.f32.mrf.mxu0
        %v619 = vadd.f32 0.0, %v618
        %620 = vmatmul.bf16.gmra.mxu0 %v408
        %v621 = vpop.f32.mrf.mxu0
        %v622 = vadd.f32 0.0, %v621
        %v623 = vpop.f32.mrf.mxu0
        %v624 = vadd.f32 0.0, %v623
        %625 = vdwg.mxu0
        %626 = vmatpush.bf16.msra.mxu0 %v542
        %627 = vmatpush.bf16.msra.mxu0 %v538
        %628 = vmatpush.bf16.msra.mxu0 %v534
        %629 = vmatpush.bf16.msra.mxu0 %v530
        %630 = vmatpush.bf16.msra.mxu0 %v526
        %631 = vmatpush.bf16.msra.mxu0 %v522
        %632 = vmatpush.bf16.msra.mxu0 %v518
        %633 = vmatpush.bf16.msra.mxu0 %v514
        %634 = vmatmul.bf16.gmra.mxu0 %v401
        %v635 = vpop.f32.mrf.mxu0
        %v636 = vadd.f32 0.0, %v635
        %v637 = vpop.f32.mrf.mxu0
        %v638 = vadd.f32 0.0, %v637
        %639 = vmatmul.bf16.gmra.mxu0 %v402
        %v640 = vpop.f32.mrf.mxu0
        %v641 = vadd.f32 0.0, %v640
        %v642 = vpop.f32.mrf.mxu0
        %v643 = vadd.f32 0.0, %v642
        %644 = vmatmul.bf16.gmra.mxu0 %v403
        %v645 = vpop.f32.mrf.mxu0
        %v646 = vadd.f32 0.0, %v645
        %v647 = vpop.f32.mrf.mxu0
        %v648 = vadd.f32 0.0, %v647
        %649 = vmatmul.bf16.gmra.mxu0 %v404
        %v650 = vpop.f32.mrf.mxu0
        %v651 = vadd.f32 0.0, %v650
        %v652 = vpop.f32.mrf.mxu0
        %v653 = vadd.f32 0.0, %v652
        %654 = vmatmul.bf16.gmra.mxu0 %v405
        %v655 = vpop.f32.mrf.mxu0
        %v656 = vadd.f32 0.0, %v655
        %v657 = vpop.f32.mrf.mxu0
        %v658 = vadd.f32 0.0, %v657
        %659 = vmatmul.bf16.gmra.mxu0 %v406
        %v660 = vpop.f32.mrf.mxu0
        %v661 = vadd.f32 0.0, %v660
        %v662 = vpop.f32.mrf.mxu0
        %v663 = vadd.f32 0.0, %v662
        %664 = vmatmul.bf16.gmra.mxu0 %v407
        %v665 = vpop.f32.mrf.mxu0
        %v666 = vadd.f32 0.0, %v665
        %v667 = vpop.f32.mrf.mxu0
        %v668 = vadd.f32 0.0, %v667
        %669 = vmatmul.bf16.gmra.mxu0 %v408
        %v670 = vpop.f32.mrf.mxu0
        %v671 = vadd.f32 0.0, %v670
        %v672 = vpop.f32.mrf.mxu0
        %v673 = vadd.f32 0.0, %v672
        %674 = vdwg.mxu0
        %675 = vmatpush.bf16.msra.mxu0 %v543
        %676 = vmatpush.bf16.msra.mxu0 %v539
        %677 = vmatpush.bf16.msra.mxu0 %v535
        %678 = vmatpush.bf16.msra.mxu0 %v531
        %679 = vmatpush.bf16.msra.mxu0 %v527
        %680 = vmatpush.bf16.msra.mxu0 %v523
        %681 = vmatpush.bf16.msra.mxu0 %v519
        %682 = vmatpush.bf16.msra.mxu0 %v515
        %683 = vmatmul.bf16.gmra.mxu0 %v401
        %v684 = vpop.f32.mrf.mxu0
        %v685 = vadd.f32 0.0, %v684
        %v686 = vpop.f32.mrf.mxu0
        %v687 = vadd.f32 0.0, %v686
        %688 = vmatmul.bf16.gmra.mxu0 %v402
        %v689 = vpop.f32.mrf.mxu0
        %v690 = vadd.f32 0.0, %v689
        %v691 = vpop.f32.mrf.mxu0
        %v692 = vadd.f32 0.0, %v691
        %693 = vmatmul.bf16.gmra.mxu0 %v403
        %v694 = vpop.f32.mrf.mxu0
        %v695 = vadd.f32 0.0, %v694
        %v696 = vpop.f32.mrf.mxu0
        %v697 = vadd.f32 0.0, %v696
        %698 = vmatmul.bf16.gmra.mxu0 %v404
        %v699 = vpop.f32.mrf.mxu0
        %v700 = vadd.f32 0.0, %v699
        %v701 = vpop.f32.mrf.mxu0
        %v702 = vadd.f32 0.0, %v701
        %703 = vmatmul.bf16.gmra.mxu0 %v405
        %v704 = vpop.f32.mrf.mxu0
        %v705 = vadd.f32 0.0, %v704
        %v706 = vpop.f32.mrf.mxu0
        %v707 = vadd.f32 0.0, %v706
        %708 = vmatmul.bf16.gmra.mxu0 %v406
        %v709 = vpop.f32.mrf.mxu0
        %v710 = vadd.f32 0.0, %v709
        %v711 = vpop.f32.mrf.mxu0
        %v712 = vadd.f32 0.0, %v711
        %713 = vmatmul.bf16.gmra.mxu0 %v407
        %v714 = vpop.f32.mrf.mxu0
        %v715 = vadd.f32 0.0, %v714
        %v716 = vpop.f32.mrf.mxu0
        %v717 = vadd.f32 0.0, %v716
        %718 = vmatmul.bf16.gmra.mxu0 %v408
        %v719 = vpop.f32.mrf.mxu0
        %v720 = vadd.f32 0.0, %v719
        %v721 = vpop.f32.mrf.mxu0
        %v722 = vadd.f32 0.0, %v721
        %723 = vdwg.mxu0
        %724 = vmatpush.bf16.msra.mxu0 %v544
        %725 = vmatpush.bf16.msra.mxu0 %v540
        %726 = vmatpush.bf16.msra.mxu0 %v536
        %727 = vmatpush.bf16.msra.mxu0 %v532
        %728 = vmatpush.bf16.msra.mxu0 %v528
        %729 = vmatpush.bf16.msra.mxu0 %v524
        %730 = vmatpush.bf16.msra.mxu0 %v520
        %731 = vmatpush.bf16.msra.mxu0 %v516
        %732 = vmatmul.bf16.gmra.mxu0 %v401
        %v733 = vpop.f32.mrf.mxu0
        %v734 = vadd.f32 0.0, %v733
        %v735 = vpop.f32.mrf.mxu0
        %v736 = vadd.f32 0.0, %v735
        %737 = vmatmul.bf16.gmra.mxu0 %v402
        %v738 = vpop.f32.mrf.mxu0
        %v739 = vadd.f32 0.0, %v738
        %v740 = vpop.f32.mrf.mxu0
        %v741 = vadd.f32 0.0, %v740
        %742 = vmatmul.bf16.gmra.mxu0 %v403
        %v743 = vpop.f32.mrf.mxu0
        %v744 = vadd.f32 0.0, %v743
        %v745 = vpop.f32.mrf.mxu0
        %v746 = vadd.f32 0.0, %v745
        %747 = vmatmul.bf16.gmra.mxu0 %v404
        %v748 = vpop.f32.mrf.mxu0
        %v749 = vadd.f32 0.0, %v748
        %v750 = vpop.f32.mrf.mxu0
        %v751 = vadd.f32 0.0, %v750
        %752 = vmatmul.bf16.gmra.mxu0 %v405
        %v753 = vpop.f32.mrf.mxu0
        %v754 = vadd.f32 0.0, %v753
        %v755 = vpop.f32.mrf.mxu0
        %v756 = vadd.f32 0.0, %v755
        %757 = vmatmul.bf16.gmra.mxu0 %v406
        %v758 = vpop.f32.mrf.mxu0
        %v759 = vadd.f32 0.0, %v758
        %v760 = vpop.f32.mrf.mxu0
        %v761 = vadd.f32 0.0, %v760
        %762 = vmatmul.bf16.gmra.mxu0 %v407
        %v763 = vpop.f32.mrf.mxu0
        %v764 = vadd.f32 0.0, %v763
        %v765 = vpop.f32.mrf.mxu0
        %v766 = vadd.f32 0.0, %v765
        %767 = vmatmul.bf16.gmra.mxu0 %v408
        %v768 = vpop.f32.mrf.mxu0
        %v769 = vadd.f32 0.0, %v768
        %v770 = vpop.f32.mrf.mxu0
        %v771 = vadd.f32 0.0, %v770
        %772 = vdwg.mxu0
        %v773 = vpack.c.bf16 %v636, %v587
        %v774 = vpack.c.bf16 %v734, %v685
        %v775 = vpack.c.bf16 %v638, %v589
        %v776 = vpack.c.bf16 %v736, %v687
        %v777 = vpack.c.bf16 %v641, %v592
        %v778 = vpack.c.bf16 %v739, %v690
        %v779 = vpack.c.bf16 %v643, %v594
        %v780 = vpack.c.bf16 %v741, %v692
        %v781 = vpack.c.bf16 %v646, %v597
        %v782 = vpack.c.bf16 %v744, %v695
        %v783 = vpack.c.bf16 %v648, %v599
        %v784 = vpack.c.bf16 %v746, %v697
        %v785 = vpack.c.bf16 %v651, %v602
        %v786 = vpack.c.bf16 %v749, %v700
        %v787 = vpack.c.bf16 %v653, %v604
        %v788 = vpack.c.bf16 %v751, %v702
        %v789 = vpack.c.bf16 %v656, %v607
        %v790 = vpack.c.bf16 %v754, %v705
        %v791 = vpack.c.bf16 %v658, %v609
        %v792 = vpack.c.bf16 %v756, %v707
        %v793 = vpack.c.bf16 %v661, %v612
        %v794 = vpack.c.bf16 %v759, %v710
        %v795 = vpack.c.bf16 %v663, %v614
        %v796 = vpack.c.bf16 %v761, %v712
        %v797 = vpack.c.bf16 %v666, %v617
        %v798 = vpack.c.bf16 %v764, %v715
        %v799 = vpack.c.bf16 %v668, %v619
        %v800 = vpack.c.bf16 %v766, %v717
        %v801 = vpack.c.bf16 %v671, %v622
        %v802 = vpack.c.bf16 %v769, %v720
        %v803 = vpack.c.bf16 %v673, %v624
        %v804 = vpack.c.bf16 %v771, %v722
        %805 = vst [vmem:[%s247] sm:$0xff] %v773
        %806 = vst [vmem:[%s247 + $0x8] sm:$0xff] %v774
        %807 = vst [vmem:[%s247 + $0x10] sm:$0xff] %v775
        %808 = vst [vmem:[%s247 + $0x18] sm:$0xff] %v776
        %809 = vst [vmem:[%s247 + $0x20] sm:$0xff] %v777
        %810 = vst [vmem:[%s247 + $0x28] sm:$0xff] %v778
        %811 = vst [vmem:[%s247 + $0x30] sm:$0xff] %v779
        %812 = vst [vmem:[%s247 + $0x38] sm:$0xff] %v780
        %813 = vst [vmem:[%s247 + $0x40] sm:$0xff] %v781
        %814 = vst [vmem:[%s247 + $0x48] sm:$0xff] %v782
        %815 = vst [vmem:[%s247 + $0x50] sm:$0xff] %v783
        %816 = vst [vmem:[%s247 + $0x58] sm:$0xff] %v784
        %817 = vst [vmem:[%s247 + $0x60] sm:$0xff] %v785
        %818 = vst [vmem:[%s247 + $0x68] sm:$0xff] %v786
        %819 = vst [vmem:[%s247 + $0x70] sm:$0xff] %v787
        %820 = vst [vmem:[%s247 + $0x78] sm:$0xff] %v788
        %821 = vst [vmem:[%s247 + $0x80] sm:$0xff] %v789
        %822 = vst [vmem:[%s247 + $0x88] sm:$0xff] %v790
        %823 = vst [vmem:[%s247 + $0x90] sm:$0xff] %v791
        %824 = vst [vmem:[%s247 + $0x98] sm:$0xff] %v792
        %825 = vst [vmem:[%s247 + $0xa0] sm:$0xff] %v793
        %826 = vst [vmem:[%s247 + $0xa8] sm:$0xff] %v794
        %827 = vst [vmem:[%s247 + $0xb0] sm:$0xff] %v795
        %828 = vst [vmem:[%s247 + $0xb8] sm:$0xff] %v796
        %829 = vst [vmem:[%s247 + $0xc0] sm:$0xff] %v797
        %830 = vst [vmem:[%s247 + $0xc8] sm:$0xff] %v798
        %831 = vst [vmem:[%s247 + $0xd0] sm:$0xff] %v799
        %832 = vst [vmem:[%s247 + $0xd8] sm:$0xff] %v800
        %833 = vst [vmem:[%s247 + $0xe0] sm:$0xff] %v801
        %834 = vst [vmem:[%s247 + $0xe8] sm:$0xff] %v802
        %835 = vst [vmem:[%s247 + $0xf0] sm:$0xff] %v803
        %836 = vst [vmem:[%s247 + $0xf8] sm:$0xff] %v804
        %s837 = sand.u32 %s107, 1
        %s838 = scalar_lea.sflag [#allocation8], %s837
        %s839 = sand.u32 %s107, 1
        %s840 = smul.addr %s839, 128
        %s841 = scalar_lea.vmem [#allocation11], %s840
        %s842 = sand.u32 %s135, 1
        %s843 = scalar_lea.sflag [#allocation13], %s842
        %s844 = sand.u32 %s135, 1
        %s845 = smul.addr %s844, 256
        %s846 = scalar_lea.vmem [#allocation12], %s845
        // Predicated region
        $region48: #{tpu_custom_call.1} parent=27 // pred_check
          %p847 = pneg %p117
        $region49: #{tpu_custom_call.1} parent=27 // pred_check_branch
          %849 = sbr.rel (%p847) target = $region51
        $region50: #{tpu_custom_call.1} parent=27 // pred_region
          %s850 = smul.u32 16, %s44
          %852 = vsyncadd %s838, 0
          %s853 = smul.addr %s850, 8
          %s854 = scalar_lea.hbm %s4, %s853
          %s855 = sshll.u32 %s841, 4
          %s856 = int_to_ptr.vmem [resolvable:$true] %s855
          %s857 = sshll.u32 %s854, 4
          %s858 = int_to_ptr.hbm [resolvable:$true] %s857
          %863 = dma.vmem_to_hbm [thread:$0]  %s856, 2048, %s858, %s838, 128, 128, 8
        $region51: #{tpu_custom_call.1} parent=27 // pred_fallthru
          _
        // Predicated region
        $region52: #{tpu_custom_call.1} parent=27 // pred_check
          %p864 = pneg %p145
        $region53: #{tpu_custom_call.1} parent=27 // pred_check_branch
          %866 = sbr.rel (%p864) target = $region55
        $region54: #{tpu_custom_call.1} parent=27 // pred_region
          %s867 = smul.u32 16, %s44
          %s868 = smul.u32 4, %s45
          %870 = vsyncadd %s843, 0
          %s871 = smul.addr %s867, 8
          %s872 = sadd.s32 %s868, %s871
          %s873 = smul.addr %s872, 4
          %s874 = scalar_lea.hbm %s5, %s873
          %s875 = sshll.u32 %s846, 4
          %s876 = int_to_ptr.vmem [resolvable:$true] %s875
          %s877 = sshll.u32 %s874, 4
          %s878 = int_to_ptr.hbm [resolvable:$true] %s877
          %883 = dma.vmem_to_hbm [thread:$0]  %s876, 4096, %s878, %s843, 256, 512, 16
        $region55: #{tpu_custom_call.1} parent=27 // pred_fallthru
          _
      $region28: #{tpu_custom_call.1} parent=5 // pred_fallthru
        _
      %p884 = scmp.le.s32.totalorder 2, %s35
      // Predicated region
      $region56: #{tpu_custom_call.1} parent=5 // pred_check
        %p885 = pneg %p884
      $region57: #{tpu_custom_call.1} parent=5 // pred_check_branch
        %887 = sbr.rel (%p885) target = $region59
      $region58: #{tpu_custom_call.1} parent=5 // pred_region
        %s888 = ssub.s32 %s35, 2
        // Predicated region
        $region60: #{tpu_custom_call.1} parent=58 // pred_check
          %p889 = pneg %p123
        $region61: #{tpu_custom_call.1} parent=58 // pred_check_branch
          %891 = sbr.rel (%p889) target = $region63
        $region62: #{tpu_custom_call.1} parent=58 // pred_region
          %s892 = sand.u32 %s108, 1
          %s893 = scalar_lea.sflag [#allocation8], %s892
          %s894 = sand.u32 %s108, 1
          %s895 = smul.addr %s894, 128
          %s896 = scalar_lea.vmem [#allocation11], %s895
          %898 = dma.done %s893, 2048
        $region63: #{tpu_custom_call.1} parent=58 // pred_fallthru
          _
        // Predicated region
        $region64: #{tpu_custom_call.1} parent=58 // pred_check
          %p899 = pneg %p151
        $region65: #{tpu_custom_call.1} parent=58 // pred_check_branch
          %901 = sbr.rel (%p899) target = $region67
        $region66: #{tpu_custom_call.1} parent=58 // pred_region
          %s902 = sand.u32 %s136, 1
          %s903 = scalar_lea.sflag [#allocation13], %s902
          %s904 = sand.u32 %s136, 1
          %s905 = smul.addr %s904, 256
          %s906 = scalar_lea.vmem [#allocation12], %s905
          %908 = dma.done %s903, 4096
        $region67: #{tpu_custom_call.1} parent=58 // pred_fallthru
          _
      $region59: #{tpu_custom_call.1} parent=5 // pred_fallthru
        _
    $region6: #{tpu_custom_call.1} parent=1 // loop_footer
      %s39 = sadd.s32 1, %s35
    $region7: #{tpu_custom_call.1} parent=1 // loop_footer_branch
      %34 = sbr.rel target = $region3
    $region8: #{tpu_custom_call.1} parent=1 // loop_exit
      _
    %909 = vsyncpa [#allocation7], 1
    %s910 = scalar_lea.sflag [#allocation7], 1
    %911 = vsyncpa %s910, 1
    %912 = vsyncpa [#allocation10], 1
    %s913 = scalar_lea.sflag [#allocation10], 1
    %914 = vsyncpa %s913, 1
    %915 = vsyncpa [#allocation8], 1
    %s916 = scalar_lea.sflag [#allocation8], 1
    %917 = vsyncpa %s916, 1
    %918 = vsyncpa [#allocation13], 1
    %s919 = scalar_lea.sflag [#allocation13], 1
    %920 = vsyncpa %s919, 1

</llo_original>
